<compile_context>
chip_gen: v7x
topology: tpu7x:2x2x1
jax: 0.10.0
libtpu: 0.0.40
codegen_flags: <defaults>
</compile_context>

<pallas_src>
import functools

import jax
import jax.numpy as jnp
import numpy as np
from jax import lax
from jax.experimental import pallas as pl
from jax.experimental.pallas import tpu as pltpu


def sample_attention_kernel(q_ref, kv_ref, wq_ref, wk_ref, wv_ref,
                            bq_ref, bk_ref, bv_ref, o_ref, *, TB, S, dim):
    Q = q_ref[...]                                   # (TB, dim) f32 (residual)
    Qb = Q.astype(jnp.bfloat16)
    KVb = kv_ref[...].astype(jnp.bfloat16)           # (TB*S, dim) bf16

    # Projections on the MXU: bf16 operands, f32 accumulation.  Weights keep
    # the PyTorch (out, in) layout; contracting over the shared `in` axis is
    # X @ W.T with no transpose.  The 1/sqrt(dim) score scale is pre-folded
    # into wq/bq on the host, so no per-element scale multiply here.
    dn = (((1,), (1,)), ((), ()))
    query = lax.dot_general(Qb, wq_ref[...], dn,
                            preferred_element_type=jnp.float32) + bq_ref[...]
    key = lax.dot_general(KVb, wk_ref[...], dn,
                          preferred_element_type=jnp.float32) + bk_ref[...]
    val = lax.dot_general(KVb, wv_ref[...], dn,
                          preferred_element_type=jnp.float32) + bv_ref[...]

    # Lane dim (dim) preserved; for S a multiple of 8 this reshape is
    # layout-preserving (pure relabeling of sublane tiles).
    key3 = key.reshape(TB, S, dim)                   # (TB, S, dim) f32
    val3 = val.reshape(TB, S, dim)                   # (TB, S, dim) f32

    # Per-sample scores: VPU broadcast-multiply + XLU lane reduction over dim.
    # (No (TB, TB*S) block-diagonal matmul -> no TBx redundant MXU/exp work
    # and no runtime iota // == mask.)
    s = jnp.sum(query[:, None, :] * key3, axis=-1)   # (TB, S) f32

    m = jnp.max(s, axis=-1, keepdims=True)
    e = jnp.exp(s - m)                               # (TB, S)
    denom = jnp.sum(e, axis=-1, keepdims=True)       # (TB, 1)

    # Weighted value sum: VPU multiply + XLU sublane reduction over S; the
    # softmax divide is an EUP approximate reciprocal of the un-normalized sum.
    out = jnp.sum(e[:, :, None] * val3, axis=1)      # (TB, dim) f32
    out = out * pl.reciprocal(denom, approx=True)

    # Single lane-contiguous (TB, dim) store; dropout == identity in eval mode.
    o_ref[...] = (out + 0.1 * Q).astype(o_ref.dtype)


def _round_up(x, m):
    return ((x + m - 1) // m) * m


def _choose_batch_tile(B, S, dim, *, max_tb=128, act_budget_bytes=20 << 20):
    """Pick a sublane-aligned batch tile.

    Large tiles amortize the ~0.35us fixed per-grid-step overhead and fill the
    MXU M dimension; the byte cap keeps the double-buffered activation tiles
    plus the in-kernel f32 key/val temporaries inside v7x's 32 MiB default
    scoped VMEM.  When B is larger than one tile we also prefer >= 2 grid
    steps so both v7x TensorCores get work.
    """
    if B <= 8:
        return B  # block == full batch axis (always a legal block shape)

    def step_bytes(tb):
        q_o = 2 * 2 * tb * dim * 4        # Q in + out tiles, f32, double-buffered
        kv = 2 * tb * S * dim * 4         # K_V tile, f32, double-buffered
        tmp = 2 * tb * S * dim * 4        # in-kernel key/val f32 projections
        return q_o + kv + tmp

    tb = max_tb
    while tb > 8 and step_bytes(tb) > act_budget_bytes:
        tb //= 2
    # Keep >= 2 grid steps when possible (v7x has 2 TensorCores per chip).
    while tb > 8 and _round_up(B, tb) <= tb:
        tb //= 2
    return tb


def sample_attention(Q, K_V, Wq, bq, Wk, bk, Wv, bv):
    """Q: (B, dim), K_V: (B, S, dim); weights in PyTorch (out, in) layout."""
    B, dim = Q.shape
    _, S, _ = K_V.shape

    # Host-side "init time" prep (done once per model in practice): fold the
    # 1/sqrt(dim) score scale into the query projection and cast the matmul
    # weights to bf16 (the fast MXU path on v5e/v6e/v7x).  Biases stay f32 and
    # are added after the f32 accumulation.
    scale = 1.0 / float(np.sqrt(dim))
    wq = (Wq * scale).astype(jnp.bfloat16)
    wk = Wk.astype(jnp.bfloat16)
    wv = Wv.astype(jnp.bfloat16)
    bq2 = (bq * scale).astype(jnp.float32)[None, :]
    bk2 = bk.astype(jnp.float32)[None, :]
    bv2 = bv.astype(jnp.float32)[None, :]

    TB = _choose_batch_tile(B, S, dim)
    B_pad = _round_up(B, TB)
    if B_pad != B:
        # Pad the batch to a tile multiple instead of a whole-batch block
        # (padded rows are numerically harmless and sliced off below).
        Q_in = jnp.pad(Q, ((0, B_pad - B), (0, 0)))
        KV_in = jnp.pad(K_V, ((0, B_pad - B), (0, 0), (0, 0)))
    else:
        Q_in, KV_in = Q, K_V
    kv_flat = KV_in.reshape(B_pad * S, dim)
    nb = B_pad // TB

    # Resident (constant index_map) weights only need one pipeline buffer; only
    # request it when the weights are big enough for the dead double-buffer to
    # matter (negligible at dim=32).
    wkw = dict(pipeline_mode=pl.Buffered(1)) if dim >= 128 else {}

    kernel = functools.partial(sample_attention_kernel, TB=TB, S=S, dim=dim)

    out = pl.pallas_call(
        kernel,
        out_shape=jax.ShapeDtypeStruct((B_pad, dim), Q.dtype),
        grid=(nb,),
        in_specs=[
            pl.BlockSpec((TB, dim), lambda i: (i, 0)),           # Q batch tile
            pl.BlockSpec((TB * S, dim), lambda i: (i, 0)),       # K_V tile (flat)
            pl.BlockSpec((dim, dim), lambda i: (0, 0), **wkw),   # Wq (resident)
            pl.BlockSpec((dim, dim), lambda i: (0, 0), **wkw),   # Wk (resident)
            pl.BlockSpec((dim, dim), lambda i: (0, 0), **wkw),   # Wv (resident)
            pl.BlockSpec((1, dim), lambda i: (0, 0), **wkw),     # bq (scaled)
            pl.BlockSpec((1, dim), lambda i: (0, 0), **wkw),     # bk
            pl.BlockSpec((1, dim), lambda i: (0, 0), **wkw),     # bv
        ],
        # TODO(synk): for dim < 128 this (TB, dim) store uses masked partial
        # lanes; a lane-dense (TB*dim//128, 128) output view would need an
        # in-kernel sublane->lane relayout that is not worth it at this size.
        out_specs=pl.BlockSpec((TB, dim), lambda i: (i, 0)),
        compiler_params=pltpu.CompilerParams(
            dimension_semantics=("parallel",),
            vmem_limit_bytes=32 * 1024 * 1024,  # explicit budget; fits v7x
        ),
    )(Q_in, kv_flat, wq, wk, wv, bq2, bk2, bv2)

    return out[:B] if B_pad != B else out


def reference(Q, K_V, Wq, bq, Wk, bk, Wv, bv):
    dim = Q.shape[-1]
    query = Q @ Wq.T + bq
    key = K_V @ Wk.T + bk
    val = K_V @ Wv.T + bv
    s = jnp.einsum("bd,bsd->bs", query, key) / jnp.sqrt(jnp.float32(dim))
    p = jax.nn.softmax(s, axis=-1)
    out = jnp.einsum("bs,bsd->bd", p, val)
    return out + 0.1 * Q


if __name__ == "__main__":
    B, S, dim = 2, 8, 32
    dropout_p = 0.1  # unused in deterministic (eval-mode) forward

    key = jax.random.PRNGKey(0)
    kq, kkv, k1, k2, k3, k4, k5, k6 = jax.random.split(key, 8)

    Q = jax.random.normal(kq, (B, dim), dtype=jnp.float32)
    K_V = jax.random.normal(kkv, (B, S, dim), dtype=jnp.float32)

    # xavier_normal for weights: std = sqrt(2 / (fan_in + fan_out)) = sqrt(1/dim)
    w_std = float(np.sqrt(2.0 / (dim + dim)))
    Wq = jax.random.normal(k1, (dim, dim), dtype=jnp.float32) * w_std
    Wk = jax.random.normal(k2, (dim, dim), dtype=jnp.float32) * w_std
    Wv = jax.random.normal(k3, (dim, dim), dtype=jnp.float32) * w_std
    # PyTorch Linear default bias init: U(-1/sqrt(fan_in), 1/sqrt(fan_in))
    b_bound = 1.0 / float(np.sqrt(dim))
    bq = jax.random.uniform(k4, (dim,), jnp.float32, -b_bound, b_bound)
    bk = jax.random.uniform(k5, (dim,), jnp.float32, -b_bound, b_bound)
    bv = jax.random.uniform(k6, (dim,), jnp.float32, -b_bound, b_bound)

    y = sample_attention(Q, K_V, Wq, bq, Wk, bk, Wv, bv)
    y = jax.block_until_ready(y)

    y_ref = reference(Q, K_V, Wq, bq, Wk, bk, Wv, bv)
    # Tolerance is loosened vs the f32 reference because the projections use
    # bf16 MXU operands (f32 accumulation) and the softmax normalization uses
    # the EUP approximate reciprocal (~2^-12 relative).
    np.testing.assert_allclose(np.asarray(y), np.asarray(y_ref),
                               rtol=5e-2, atol=5e-2)

    print("KERNEL_OK")
</pallas_src>

<mosaic_0001>
module attributes {stable_mosaic.version = 11 : i64} {
  func.func @sample_attention_kernel(%arg0: i32, %arg1: memref<2x32xf32, #tpu.memory_space<vmem>>, %arg2: memref<16x32xf32, #tpu.memory_space<vmem>>, %arg3: memref<32x32xbf16, #tpu.memory_space<vmem>>, %arg4: memref<32x32xbf16, #tpu.memory_space<vmem>>, %arg5: memref<32x32xbf16, #tpu.memory_space<vmem>>, %arg6: memref<1x32xf32, #tpu.memory_space<vmem>>, %arg7: memref<1x32xf32, #tpu.memory_space<vmem>>, %arg8: memref<1x32xf32, #tpu.memory_space<vmem>>, %arg9: memref<2x32xf32, #tpu.memory_space<vmem>>) attributes {dimension_semantics = [#tpu.dimension_semantics<parallel>], iteration_bounds = array<i64: 1>, scalar_prefetch = 0 : i64, scratch_operands = 0 : i64, tpu.core_type = #tpu.core_type<tc>, window_params = [{transform_indices = @transform_0, window_bounds = array<i64: 2, 32>}, {transform_indices = @transform_1, window_bounds = array<i64: 16, 32>}, {pipeline_mode = #tpu.pipeline_mode<synchronous>, transform_indices = @transform_2, window_bounds = array<i64: 32, 32>}, {pipeline_mode = #tpu.pipeline_mode<synchronous>, transform_indices = @transform_3, window_bounds = array<i64: 32, 32>}, {pipeline_mode = #tpu.pipeline_mode<synchronous>, transform_indices = @transform_4, window_bounds = array<i64: 32, 32>}, {pipeline_mode = #tpu.pipeline_mode<synchronous>, transform_indices = @transform_5, window_bounds = array<i64: 1, 32>}, {pipeline_mode = #tpu.pipeline_mode<synchronous>, transform_indices = @transform_6, window_bounds = array<i64: 1, 32>}, {pipeline_mode = #tpu.pipeline_mode<synchronous>, transform_indices = @transform_7, window_bounds = array<i64: 1, 32>}, {transform_indices = @transform_8, window_bounds = array<i64: 2, 32>}]} {
    %c0 = arith.constant 0 : index
    %c0_0 = arith.constant 0 : index
    %0 = vector.load %arg1[%c0, %c0_0] : memref<2x32xf32, #tpu.memory_space<vmem>>, vector<2x32xf32>
    %1 = arith.truncf %0 : vector<2x32xf32> to vector<2x32xbf16>
    %c0_1 = arith.constant 0 : index
    %c0_2 = arith.constant 0 : index
    %2 = vector.load %arg2[%c0_1, %c0_2] : memref<16x32xf32, #tpu.memory_space<vmem>>, vector<16x32xf32>
    %3 = arith.truncf %2 : vector<16x32xf32> to vector<16x32xbf16>
    %c0_3 = arith.constant 0 : index
    %c0_4 = arith.constant 0 : index
    %4 = vector.load %arg3[%c0_3, %c0_4] : memref<32x32xbf16, #tpu.memory_space<vmem>>, vector<32x32xbf16>
    %cst = arith.constant dense<0.000000e+00> : vector<2x32xf32>
    %5 = tpu.matmul %1, %4, %cst {dimension_numbers = #tpu.dot_dimension_numbers<[1], [1], [0], [0], [0, 0, 1, 0], [], []>} : vector<2x32xbf16>, vector<32x32xbf16>, vector<2x32xf32> -> vector<2x32xf32>
    %c0_5 = arith.constant 0 : index
    %c0_6 = arith.constant 0 : index
    %6 = vector.load %arg6[%c0_5, %c0_6] : memref<1x32xf32, #tpu.memory_space<vmem>>, vector<1x32xf32>
    %7 = vector.broadcast %6 : vector<1x32xf32> to vector<2x32xf32>
    %8 = arith.addf %5, %7 : vector<2x32xf32>
    %c0_7 = arith.constant 0 : index
    %c0_8 = arith.constant 0 : index
    %9 = vector.load %arg4[%c0_7, %c0_8] : memref<32x32xbf16, #tpu.memory_space<vmem>>, vector<32x32xbf16>
    %cst_9 = arith.constant dense<0.000000e+00> : vector<16x32xf32>
    %10 = tpu.matmul %3, %9, %cst_9 {dimension_numbers = #tpu.dot_dimension_numbers<[1], [1], [0], [0], [0, 0, 1, 0], [], []>} : vector<16x32xbf16>, vector<32x32xbf16>, vector<16x32xf32> -> vector<16x32xf32>
    %c0_10 = arith.constant 0 : index
    %c0_11 = arith.constant 0 : index
    %11 = vector.load %arg7[%c0_10, %c0_11] : memref<1x32xf32, #tpu.memory_space<vmem>>, vector<1x32xf32>
    %12 = vector.broadcast %11 : vector<1x32xf32> to vector<16x32xf32>
    %13 = arith.addf %10, %12 : vector<16x32xf32>
    %c0_12 = arith.constant 0 : index
    %c0_13 = arith.constant 0 : index
    %14 = vector.load %arg5[%c0_12, %c0_13] : memref<32x32xbf16, #tpu.memory_space<vmem>>, vector<32x32xbf16>
    %cst_14 = arith.constant dense<0.000000e+00> : vector<16x32xf32>
    %15 = tpu.matmul %3, %14, %cst_14 {dimension_numbers = #tpu.dot_dimension_numbers<[1], [1], [0], [0], [0, 0, 1, 0], [], []>} : vector<16x32xbf16>, vector<32x32xbf16>, vector<16x32xf32> -> vector<16x32xf32>
    %c0_15 = arith.constant 0 : index
    %c0_16 = arith.constant 0 : index
    %16 = vector.load %arg8[%c0_15, %c0_16] : memref<1x32xf32, #tpu.memory_space<vmem>>, vector<1x32xf32>
    %17 = vector.broadcast %16 : vector<1x32xf32> to vector<16x32xf32>
    %18 = arith.addf %15, %17 : vector<16x32xf32>
    %19 = vector.shape_cast %13 : vector<16x32xf32> to vector<2x8x32xf32>
    %20 = vector.shape_cast %18 : vector<16x32xf32> to vector<2x8x32xf32>
    %21 = vector.shape_cast %8 : vector<2x32xf32> to vector<2x1x32xf32>
    %22 = vector.broadcast %21 : vector<2x1x32xf32> to vector<2x8x32xf32>
    %23 = arith.mulf %22, %19 : vector<2x8x32xf32>
    %cst_17 = arith.constant dense<0.000000e+00> : vector<2x8xf32>
    %24 = vector.multi_reduction <add>, %23, %cst_17 [2] : vector<2x8x32xf32> to vector<2x8xf32>
    %cst_18 = arith.constant dense<0xFF800000> : vector<2xf32>
    %25 = vector.multi_reduction <maximumf>, %24, %cst_18 [1] : vector<2x8xf32> to vector<2xf32>
    %26 = vector.shape_cast %25 : vector<2xf32> to vector<2x1xf32>
    %27 = vector.broadcast %26 : vector<2x1xf32> to vector<2x8xf32>
    %28 = arith.subf %24, %27 : vector<2x8xf32>
    %29 = math.exp %28 : vector<2x8xf32>
    %cst_19 = arith.constant dense<0.000000e+00> : vector<2xf32>
    %30 = vector.multi_reduction <add>, %29, %cst_19 [1] : vector<2x8xf32> to vector<2xf32>
    %31 = vector.shape_cast %30 : vector<2xf32> to vector<2x1xf32>
    %32 = vector.shape_cast %29 : vector<2x8xf32> to vector<2x8x1xf32>
    %33 = vector.broadcast %32 : vector<2x8x1xf32> to vector<2x8x32xf32>
    %34 = arith.mulf %33, %20 : vector<2x8x32xf32>
    %cst_20 = arith.constant dense<0.000000e+00> : vector<2x32xf32>
    %35 = vector.multi_reduction <add>, %34, %cst_20 [1] : vector<2x8x32xf32> to vector<2x32xf32>
    %36 = tpu.reciprocal %31 {approx = true} : vector<2x1xf32> -> vector<2x1xf32>
    %37 = vector.broadcast %36 : vector<2x1xf32> to vector<2x32xf32>
    %38 = arith.mulf %35, %37 : vector<2x32xf32>
    %cst_21 = arith.constant 1.000000e-01 : f32
    %39 = vector.broadcast %cst_21 : f32 to vector<2x32xf32>
    %40 = arith.mulf %39, %0 : vector<2x32xf32>
    %41 = arith.addf %38, %40 : vector<2x32xf32>
    %c0_22 = arith.constant 0 : index
    %c0_23 = arith.constant 0 : index
    %42 = vector.load %arg9[%c0_22, %c0_23] : memref<2x32xf32, #tpu.memory_space<vmem>>, vector<2x32xf32>
    tpu.vector_store %arg9[%c0_22, %c0_23], %41 {strides = array<i32>} : memref<2x32xf32, #tpu.memory_space<vmem>>, vector<2x32xf32>,
    return
  }
  func.func @transform_0(%arg0: i32) -> (i32, i32) {
    %c0_i32 = arith.constant 0 : i32
    %c0_i32_0 = arith.constant 0 : i32
    return %arg0, %c0_i32 : i32, i32
  }
  func.func @transform_1(%arg0: i32) -> (i32, i32) {
    %c0_i32 = arith.constant 0 : i32
    %c0_i32_0 = arith.constant 0 : i32
    return %arg0, %c0_i32 : i32, i32
  }
  func.func @transform_2(%arg0: i32) -> (i32, i32) {
    %c0_i32 = arith.constant 0 : i32
    %c0_i32_0 = arith.constant 0 : i32
    %c0_i32_1 = arith.constant 0 : i32
    return %c0_i32, %c0_i32_0 : i32, i32
  }
  func.func @transform_3(%arg0: i32) -> (i32, i32) {
    %c0_i32 = arith.constant 0 : i32
    %c0_i32_0 = arith.constant 0 : i32
    %c0_i32_1 = arith.constant 0 : i32
    return %c0_i32, %c0_i32_0 : i32, i32
  }
  func.func @transform_4(%arg0: i32) -> (i32, i32) {
    %c0_i32 = arith.constant 0 : i32
    %c0_i32_0 = arith.constant 0 : i32
    %c0_i32_1 = arith.constant 0 : i32
    return %c0_i32, %c0_i32_0 : i32, i32
  }
  func.func @transform_5(%arg0: i32) -> (i32, i32) {
    %c0_i32 = arith.constant 0 : i32
    %c0_i32_0 = arith.constant 0 : i32
    %c0_i32_1 = arith.constant 0 : i32
    return %c0_i32, %c0_i32_0 : i32, i32
  }
  func.func @transform_6(%arg0: i32) -> (i32, i32) {
    %c0_i32 = arith.constant 0 : i32
    %c0_i32_0 = arith.constant 0 : i32
    %c0_i32_1 = arith.constant 0 : i32
    return %c0_i32, %c0_i32_0 : i32, i32
  }
  func.func @transform_7(%arg0: i32) -> (i32, i32) {
    %c0_i32 = arith.constant 0 : i32
    %c0_i32_0 = arith.constant 0 : i32
    %c0_i32_1 = arith.constant 0 : i32
    return %c0_i32, %c0_i32_0 : i32, i32
  }
  func.func @transform_8(%arg0: i32) -> (i32, i32) {
    %c0_i32 = arith.constant 0 : i32
    %c0_i32_0 = arith.constant 0 : i32
    return %arg0, %c0_i32 : i32, i32
  }
}

</mosaic_0001>

<llo_original>
// kernel: tpu_custom_call.1
$region0: #{tpu_custom_call.1}
  #allocation0 [shape = 'u32[]', space=smem, size = 0x4, offset = 0x4, fixed_abs, tag = 'smem constant byte address 0x4 - core index']
  #allocation1 [shape = 'u32[144,128]{1,0:T(1,128)}', space=vmem, size = 0x12000, scoped, tag = 'internal scratch']
  %s0 = inlined_call_operand.hbm [shape: f32[2,32], index: 0, kind: input, shape index: {}]
  %s1 = inlined_call_operand.hbm [shape: f32[16,32], index: 1, kind: input, shape index: {}]
  %s2 = inlined_call_operand.hbm [shape: bf16[32,32], index: 2, kind: input, shape index: {}]
  %s3 = inlined_call_operand.hbm [shape: bf16[32,32], index: 3, kind: input, shape index: {}]
  %s4 = inlined_call_operand.hbm [shape: bf16[32,32], index: 4, kind: input, shape index: {}]
  %s5 = inlined_call_operand.vmem [shape: f32[1,32], index: 5, kind: input, shape index: {}]
  %s6 = inlined_call_operand.vmem [shape: f32[1,32], index: 6, kind: input, shape index: {}]
  %s7 = inlined_call_operand.vmem [shape: f32[1,32], index: 7, kind: input, shape index: {}]
  %s8 = inlined_call_operand.hbm [shape: f32[2,32], index: 8, kind: output, shape index: {}]
  %s9 = sld [smem:[#allocation0]]
  $region62: #{tpu_custom_call.1} parent=0
    _
  %s11 = ssub.s32 1, %s9
  %s12 = scalar_select 0, %s11, %s9
  $region1: #{tpu_custom_call.1} parent=0
    #allocation2 [shape = 'u8[1024]{0}', space=vmem, size = 0x400, scoped, tag = 'input window, operand 0, single buffered']
    #allocation3 [shape = 's32[1]{0}', space=sflag, size = 0x4, scoped, tag = 'scoped memory for tpu_custom_call.1']
    #allocation4 [shape = 's32[1]{0}', space=sflag, size = 0x4, scoped, tag = 'scoped memory for tpu_custom_call.1']
    #allocation5 [shape = 'u8[8192]{0}', space=vmem, size = 0x2000, scoped, tag = 'input window, operand 1, single buffered']
    #allocation6 [shape = 's32[1]{0}', space=sflag, size = 0x4, scoped, tag = 'scoped memory for tpu_custom_call.1']
    #allocation7 [shape = 'u8[8192]{0}', space=vmem, size = 0x2000, scoped, tag = 'input window, operand 2, single buffered']
    #allocation8 [shape = 'u8[8192]{0}', space=vmem, size = 0x2000, scoped, tag = 'input window, operand 3, single buffered']
    #allocation9 [shape = 's32[1]{0}', space=sflag, size = 0x4, scoped, tag = 'scoped memory for tpu_custom_call.1']
    #allocation10 [shape = 'u8[8192]{0}', space=vmem, size = 0x2000, scoped, tag = 'input window, operand 4, single buffered']
    #allocation11 [shape = 'u8[1024]{0}', space=vmem, size = 0x400, scoped, tag = 'output window, operand 0, single buffered']
    %13 = vsyncpa [#allocation3], 0
    %14 = vsyncpa [#allocation6], 0
    %15 = vsyncpa [#allocation9], 0
    %16 = vsyncpa [#allocation4], 0
    // Predicated region
    $region2: #{tpu_custom_call.1} parent=1 // pred_check
      _
    $region3: #{tpu_custom_call.1} parent=1 // pred_check_branch
      %18 = sbr.rel (0) target = $region5
    $region4: #{tpu_custom_call.1} parent=1 // pred_region
      %s20 = ssub.s32 32, 32
      %21 = vsyncadd [#allocation3], %s20
      %s23 = sshll.u32 [#allocation2], 4
      %s24 = int_to_ptr.vmem [resolvable:$true] %s23
      %26 = dma.hbm_to_vmem [thread:$0]  %s0, 32, %s24, [#allocation3]
    $region5: #{tpu_custom_call.1} parent=1 // pred_fallthru
      _
    // Predicated region
    $region6: #{tpu_custom_call.1} parent=1 // pred_check
      _
    $region7: #{tpu_custom_call.1} parent=1 // pred_check_branch
      %28 = sbr.rel (0) target = $region9
    $region8: #{tpu_custom_call.1} parent=1 // pred_region
      %s30 = ssub.s32 256, 256
      %31 = vsyncadd [#allocation6], %s30
      %s32 = sshll.u32 [#allocation5], 4
      %s33 = int_to_ptr.vmem [resolvable:$true] %s32
      %38 = dma.hbm_to_vmem [thread:$0]  %s1, 256, %s33, [#allocation6], 128, 128, 8
    $region9: #{tpu_custom_call.1} parent=1 // pred_fallthru
      _
    // Predicated region
    $region10: #{tpu_custom_call.1} parent=1 // pred_check
      _
    $region11: #{tpu_custom_call.1} parent=1 // pred_check_branch
      %40 = sbr.rel (0) target = $region13
    $region12: #{tpu_custom_call.1} parent=1 // pred_region
      %s42 = ssub.s32 256, 256
      %43 = vsyncadd [#allocation6], %s42
      %s44 = sshll.u32 [#allocation7], 4
      %s45 = int_to_ptr.vmem [resolvable:$true] %s44
      %50 = dma.hbm_to_vmem [thread:$0]  %s2, 256, %s45, [#allocation6], 64, 64, 4
    $region13: #{tpu_custom_call.1} parent=1 // pred_fallthru
      _
    // Predicated region
    $region14: #{tpu_custom_call.1} parent=1 // pred_check
      _
    $region15: #{tpu_custom_call.1} parent=1 // pred_check_branch
      %52 = sbr.rel (0) target = $region17
    $region16: #{tpu_custom_call.1} parent=1 // pred_region
      %s54 = ssub.s32 256, 256
      %55 = vsyncadd [#allocation9], %s54
      %s56 = sshll.u32 [#allocation8], 4
      %s57 = int_to_ptr.vmem [resolvable:$true] %s56
      %62 = dma.hbm_to_vmem [thread:$0]  %s3, 256, %s57, [#allocation9], 64, 64, 4
    $region17: #{tpu_custom_call.1} parent=1 // pred_fallthru
      _
    // Predicated region
    $region18: #{tpu_custom_call.1} parent=1 // pred_check
      _
    $region19: #{tpu_custom_call.1} parent=1 // pred_check_branch
      %64 = sbr.rel (0) target = $region21
    $region20: #{tpu_custom_call.1} parent=1 // pred_region
      %s66 = ssub.s32 256, 256
      %67 = vsyncadd [#allocation9], %s66
      %s68 = sshll.u32 [#allocation10], 4
      %s69 = int_to_ptr.vmem [resolvable:$true] %s68
      %74 = dma.hbm_to_vmem [thread:$0]  %s4, 256, %s69, [#allocation9], 64, 64, 4
    $region21: #{tpu_custom_call.1} parent=1 // pred_fallthru
      _
    // Predicated region
    $region22: #{tpu_custom_call.1} parent=1 // pred_check
      _
    $region23: #{tpu_custom_call.1} parent=1 // pred_check_branch
      %76 = sbr.rel (0) target = $region25
    $region24: #{tpu_custom_call.1} parent=1 // pred_region
      _
    $region25: #{tpu_custom_call.1} parent=1 // pred_fallthru
      _
    // Predicated region
    $region26: #{tpu_custom_call.1} parent=1 // pred_check
      _
    $region27: #{tpu_custom_call.1} parent=1 // pred_check_branch
      %78 = sbr.rel (0) target = $region29
    $region28: #{tpu_custom_call.1} parent=1 // pred_region
      _
    $region29: #{tpu_custom_call.1} parent=1 // pred_fallthru
      _
    // Predicated region
    $region30: #{tpu_custom_call.1} parent=1 // pred_check
      _
    $region31: #{tpu_custom_call.1} parent=1 // pred_check_branch
      %80 = sbr.rel (0) target = $region33
    $region32: #{tpu_custom_call.1} parent=1 // pred_region
      _
    $region33: #{tpu_custom_call.1} parent=1 // pred_fallthru
      _
    // Predicated region
    $region34: #{tpu_custom_call.1} parent=1 // pred_check
      _
    $region35: #{tpu_custom_call.1} parent=1 // pred_check_branch
      %82 = sbr.rel (0) target = $region37
    $region36: #{tpu_custom_call.1} parent=1 // pred_region
      %83 = dma.done [#allocation3], 32
    $region37: #{tpu_custom_call.1} parent=1 // pred_fallthru
      _
    // Predicated region
    $region38: #{tpu_custom_call.1} parent=1 // pred_check
      _
    $region39: #{tpu_custom_call.1} parent=1 // pred_check_branch
      %85 = sbr.rel (0) target = $region41
    $region40: #{tpu_custom_call.1} parent=1 // pred_region
      %86 = dma.done [#allocation6], 256
    $region41: #{tpu_custom_call.1} parent=1 // pred_fallthru
      _
    // Predicated region
    $region42: #{tpu_custom_call.1} parent=1 // pred_check
      _
    $region43: #{tpu_custom_call.1} parent=1 // pred_check_branch
      %88 = sbr.rel (0) target = $region45
    $region44: #{tpu_custom_call.1} parent=1 // pred_region
      %89 = dma.done [#allocation6], 256
    $region45: #{tpu_custom_call.1} parent=1 // pred_fallthru
      _
    // Predicated region
    $region46: #{tpu_custom_call.1} parent=1 // pred_check
      _
    $region47: #{tpu_custom_call.1} parent=1 // pred_check_branch
      %91 = sbr.rel (0) target = $region49
    $region48: #{tpu_custom_call.1} parent=1 // pred_region
      %92 = dma.done [#allocation9], 256
    $region49: #{tpu_custom_call.1} parent=1 // pred_fallthru
      _
    // Predicated region
    $region50: #{tpu_custom_call.1} parent=1 // pred_check
      _
    $region51: #{tpu_custom_call.1} parent=1 // pred_check_branch
      %94 = sbr.rel (0) target = $region53
    $region52: #{tpu_custom_call.1} parent=1 // pred_region
      %95 = dma.done [#allocation9], 256
    $region53: #{tpu_custom_call.1} parent=1 // pred_fallthru
      _
    %v97 = vld [vmem:[#allocation2] sm:$0x3]
    %v98 = vpack.c.bf16 %v97, %v97
    %v99 = vld [vmem:[#allocation5] sm:$0xff]
    %v100 = vld [vmem:[#allocation5 + $0x8] sm:$0xff]
    %v101 = vpack.c.bf16 %v100, %v99
    %v102 = vld [vmem:[#allocation7] sm:$0xf]
    %v103 = vld [vmem:[#allocation7 + $0x4] sm:$0xf]
    %v104 = vld [vmem:[#allocation7 + $0x8] sm:$0xf]
    %v105 = vld [vmem:[#allocation7 + $0xc] sm:$0xf]
    %v106 = vld [vmem:[%s5] sm:$0x1]
    %v108 = vlaneseq
    %v109 = vshrl.u32 %v108, 7
    %v110 = vsub.s32 0, %v109
    %v111 = vrot.slane %v106, %v110
    %v117 = vunpack.c.l.b16 %v102
    %v118 = vunpack.c.l.b16 %v103
    %v119 = vunpack.c.l.b16 %v104
    %v120 = vunpack.c.l.b16 %v105
    %v121 = vpack.c.b16 %v118, %v117
    %v122 = vpack.c.b16 %v120, %v119
    %vm123 = vcmask 261120
    %v125 = vsel %vm123, %v98, 0
    %v128 = vsel %vm123, %v121, 0
    %v131 = vsel %vm123, %v122, 0
    %133 = vmatprep.subr.bf16.mxu0 0
    %134 = vmatpush1.bf16.xpose.msra.mxu0 %v128
    %135 = vmatprep.subr.bf16.mxu0 0
    %136 = vmatpush1.bf16.xpose.msra.mxu0 %v131
    %137 = vmatprep.subr.bf16.mxu0 0
    %138 = vmatpush1.bf16.xpose.msra.mxu0 0
    %139 = vmatprep.subr.bf16.mxu0 0
    %140 = vmatpush1.bf16.xpose.msra.mxu0 0
    %141 = vmatprep.subr.bf16.mxu0 0
    %142 = vmatpush1.bf16.xpose.msra.mxu0 0
    %143 = vmatprep.subr.bf16.mxu0 0
    %144 = vmatpush1.bf16.xpose.msra.mxu0 0
    %145 = vmatprep.subr.bf16.mxu0 0
    %146 = vmatpush1.bf16.xpose.msra.mxu0 0
    %147 = vmatprep.subr.bf16.mxu0 0
    %148 = vmatpush1.bf16.xpose.msra.mxu0 0
    %149 = vmatprep.subr.bf16.mxu0 0
    %150 = vmatpush1.bf16.xpose.msra.mxu0 0
    %151 = vmatprep.subr.bf16.mxu0 0
    %152 = vmatpush1.bf16.xpose.msra.mxu0 0
    %153 = vmatprep.subr.bf16.mxu0 0
    %154 = vmatpush1.bf16.xpose.msra.mxu0 0
    %155 = vmatprep.subr.bf16.mxu0 0
    %156 = vmatpush1.bf16.xpose.msra.mxu0 0
    %157 = vmatprep.subr.bf16.mxu0 0
    %158 = vmatpush1.bf16.xpose.msra.mxu0 0
    %159 = vmatprep.subr.bf16.mxu0 0
    %160 = vmatpush1.bf16.xpose.msra.mxu0 0
    %161 = vmatprep.subr.bf16.mxu0 0
    %162 = vmatpush1.bf16.xpose.msra.mxu0 0
    %163 = vmatprep.subr.bf16.mxu0 0
    %164 = vmatpush1.bf16.xpose.msra.mxu0 0
    %165 = vmatprep.mubr.bf16.mxu0 0
    %166 = vmatmul.mubr.bf16.gmra.mrb[0].mxu0 %v125
    %v167 = vpop.f32.mrb[0].mxu0
    %v168 = vadd.f32 %v111, %v167
    %v169 = vpop.f32.mrb[0].mxu0
    %v170 = vpop.f32.mrb[0].mxu0
    %v171 = vpop.f32.mrb[0].mxu0
    %172 = vdwg.mxu0
    %v173 = vld [vmem:[#allocation8] sm:$0xf]
    %v174 = vld [vmem:[#allocation8 + $0x4] sm:$0xf]
    %v175 = vld [vmem:[#allocation8 + $0x8] sm:$0xf]
    %v176 = vld [vmem:[#allocation8 + $0xc] sm:$0xf]
    %v177 = vld [vmem:[%s6] sm:$0x1]
    %v179 = vlaneseq
    %v180 = vshrl.u32 %v179, 7
    %v181 = vsub.s32 0, %v180
    %v182 = vrot.slane %v177, %v181
    %v188 = vunpack.c.l.b16 %v173
    %v189 = vunpack.c.l.b16 %v174
    %v190 = vunpack.c.l.b16 %v175
    %v191 = vunpack.c.l.b16 %v176
    %v192 = vpack.c.b16 %v189, %v188
    %v193 = vpack.c.b16 %v191, %v190
    %v195 = vsel %vm123, %v101, 0
    %v198 = vsel %vm123, %v192, 0
    %v201 = vsel %vm123, %v193, 0
    %203 = vmatprep.subr.bf16.mxu0 0
    %204 = vmatpush1.bf16.xpose.msra.mxu0 %v198
    %205 = vmatprep.subr.bf16.mxu0 0
    %206 = vmatpush1.bf16.xpose.msra.mxu0 %v201
    %207 = vmatprep.subr.bf16.mxu0 0
    %208 = vmatpush1.bf16.xpose.msra.mxu0 0
    %209 = vmatprep.subr.bf16.mxu0 0
    %210 = vmatpush1.bf16.xpose.msra.mxu0 0
    %211 = vmatprep.subr.bf16.mxu0 0
    %212 = vmatpush1.bf16.xpose.msra.mxu0 0
    %213 = vmatprep.subr.bf16.mxu0 0
    %214 = vmatpush1.bf16.xpose.msra.mxu0 0
    %215 = vmatprep.subr.bf16.mxu0 0
    %216 = vmatpush1.bf16.xpose.msra.mxu0 0
    %217 = vmatprep.subr.bf16.mxu0 0
    %218 = vmatpush1.bf16.xpose.msra.mxu0 0
    %219 = vmatprep.subr.bf16.mxu0 0
    %220 = vmatpush1.bf16.xpose.msra.mxu0 0
    %221 = vmatprep.subr.bf16.mxu0 0
    %222 = vmatpush1.bf16.xpose.msra.mxu0 0
    %223 = vmatprep.subr.bf16.mxu0 0
    %224 = vmatpush1.bf16.xpose.msra.mxu0 0
    %225 = vmatprep.subr.bf16.mxu0 0
    %226 = vmatpush1.bf16.xpose.msra.mxu0 0
    %227 = vmatprep.subr.bf16.mxu0 0
    %228 = vmatpush1.bf16.xpose.msra.mxu0 0
    %229 = vmatprep.subr.bf16.mxu0 0
    %230 = vmatpush1.bf16.xpose.msra.mxu0 0
    %231 = vmatprep.subr.bf16.mxu0 0
    %232 = vmatpush1.bf16.xpose.msra.mxu0 0
    %233 = vmatprep.subr.bf16.mxu0 0
    %234 = vmatpush1.bf16.xpose.msra.mxu0 0
    %235 = vmatprep.mubr.bf16.mxu0 0
    %236 = vmatmul.mubr.bf16.gmra.mrb[0].mxu0 %v195
    %v237 = vpop.f32.mrb[0].mxu0
    %v238 = vadd.f32 %v182, %v237
    %v239 = vpop.f32.mrb[0].mxu0
    %v240 = vpop.f32.mrb[0].mxu0
    %v241 = vadd.f32 %v182, %v240
    %v242 = vpop.f32.mrb[0].mxu0
    %243 = vdwg.mxu0
    %v244 = vld [vmem:[#allocation10] sm:$0xf]
    %v245 = vld [vmem:[#allocation10 + $0x4] sm:$0xf]
    %v246 = vld [vmem:[#allocation10 + $0x8] sm:$0xf]
    %v247 = vld [vmem:[#allocation10 + $0xc] sm:$0xf]
    %v248 = vld [vmem:[%s7] sm:$0x1]
    %v250 = vlaneseq
    %v251 = vshrl.u32 %v250, 7
    %v252 = vsub.s32 0, %v251
    %v253 = vrot.slane %v248, %v252
    %v259 = vunpack.c.l.b16 %v244
    %v260 = vunpack.c.l.b16 %v245
    %v261 = vunpack.c.l.b16 %v246
    %v262 = vunpack.c.l.b16 %v247
    %v263 = vpack.c.b16 %v260, %v259
    %v264 = vpack.c.b16 %v262, %v261
    %v266 = vsel %vm123, %v263, 0
    %v269 = vsel %vm123, %v264, 0
    %271 = vmatprep.subr.bf16.mxu0 0
    %272 = vmatpush1.bf16.xpose.msra.mxu0 %v266
    %273 = vmatprep.subr.bf16.mxu0 0
    %274 = vmatpush1.bf16.xpose.msra.mxu0 %v269
    %275 = vmatprep.subr.bf16.mxu0 0
    %276 = vmatpush1.bf16.xpose.msra.mxu0 0
    %277 = vmatprep.subr.bf16.mxu0 0
    %278 = vmatpush1.bf16.xpose.msra.mxu0 0
    %279 = vmatprep.subr.bf16.mxu0 0
    %280 = vmatpush1.bf16.xpose.msra.mxu0 0
    %281 = vmatprep.subr.bf16.mxu0 0
    %282 = vmatpush1.bf16.xpose.msra.mxu0 0
    %283 = vmatprep.subr.bf16.mxu0 0
    %284 = vmatpush1.bf16.xpose.msra.mxu0 0
    %285 = vmatprep.subr.bf16.mxu0 0
    %286 = vmatpush1.bf16.xpose.msra.mxu0 0
    %287 = vmatprep.subr.bf16.mxu0 0
    %288 = vmatpush1.bf16.xpose.msra.mxu0 0
    %289 = vmatprep.subr.bf16.mxu0 0
    %290 = vmatpush1.bf16.xpose.msra.mxu0 0
    %291 = vmatprep.subr.bf16.mxu0 0
    %292 = vmatpush1.bf16.xpose.msra.mxu0 0
    %293 = vmatprep.subr.bf16.mxu0 0
    %294 = vmatpush1.bf16.xpose.msra.mxu0 0
    %295 = vmatprep.subr.bf16.mxu0 0
    %296 = vmatpush1.bf16.xpose.msra.mxu0 0
    %297 = vmatprep.subr.bf16.mxu0 0
    %298 = vmatpush1.bf16.xpose.msra.mxu0 0
    %299 = vmatprep.subr.bf16.mxu0 0
    %300 = vmatpush1.bf16.xpose.msra.mxu0 0
    %301 = vmatprep.subr.bf16.mxu0 0
    %302 = vmatpush1.bf16.xpose.msra.mxu0 0
    %303 = vmatprep.mubr.bf16.mxu0 0
    %304 = vmatmul.mubr.bf16.gmra.mrb[0].mxu0 %v195
    %v305 = vpop.f32.mrb[0].mxu0
    %v306 = vadd.f32 %v253, %v305
    %v307 = vpop.f32.mrb[0].mxu0
    %v308 = vpop.f32.mrb[0].mxu0
    %v309 = vadd.f32 %v253, %v308
    %v310 = vpop.f32.mrb[0].mxu0
    %311 = vdwg.mxu0
    %v314 = vunpack.c.l.s4 1966171168
    %v315 = vunpack.c.0.s8 %v314
    %v316 = vlaneseq
    %v317 = vshrl.u32 %v316, 7
    %v318 = vsub.s32 %v315, %v317
    %v319 = vrot.slane %v168, %v318
    %v320 = vcombine.high %v319, %v319
    %v322 = vunpack.c.l.s4 1966171168
    %v323 = vunpack.c.0.s8 %v322
    %v324 = vlaneseq
    %v325 = vshrl.u32 %v324, 7
    %v326 = vsub.s32 %v323, %v325
    %v327 = vrot.slane %v319, %v326
    %v329 = vunpack.c.l.s4 1966171168
    %v330 = vunpack.c.0.s8 %v329
    %v331 = vlaneseq
    %v332 = vshrl.u32 %v331, 7
    %v333 = vsub.s32 %v330, %v332
    %v334 = vrot.slane %v320, %v333
    %v335 = vlaneseq
    %v336 = vshrl.u32 %v335, 7
    %v337 = vsub.s32 0, %v336
    %v338 = vrot.slane %v327, %v337
    %v339 = vlaneseq
    %v340 = vshrl.u32 %v339, 7
    %v341 = vsub.s32 0, %v340
    %v342 = vrot.slane %v334, %v341
    %v345 = vmul.f32 %v338, %v238
    %v346 = vmul.f32 %v342, %v241
    %v347 = vsel %vm123, %v345, 0.0
    %348 = vadd.xlane.f32.xlu0 %v347
    %v349 = vpop.xlane.xlu0 %348
    %v350 = vsel %vm123, %v346, 0.0
    %351 = vadd.xlane.f32.xlu0 %v350
    %v352 = vpop.xlane.xlu0 %351
    %v355 = vlaneseq
    %v356 = vand.u32 %v355, 127
    %v357 = vlaneseq
    %v358 = vshrl.u32 %v357, 7
    %v359 = vsub.s32 %v356, %v358
    %v360 = vrot.slane %v349, %v359
    %v361 = vlaneseq
    %v362 = vshrl.u32 %v361, 7
    %v363 = vsub.s32 %v356, %v362
    %v364 = vrot.slane %v352, %v363
    %vm365 = vcmask 1041409
    %v366 = vsel %vm365, %v364, %v360
    %vm368 = vcmask 58368
    %v369 = vsel %vm368, %v366, -inf
    %370 = vmax.xlane.f32.xlu0 %v369
    %v371 = vpop.xlane.xlu0 %370
    %v373 = vlaneseq
    %v374 = vshrl.u32 %v373, 7
    %v375 = vsub.s32 0, %v374
    %v376 = vrot.slane %v371, %v375
    %v377 = vlaneseq
    %v378 = vshrl.u32 %v377, 7
    %v379 = vsub.s32 1, %v378
    %v380 = vrot.slane %v371, %v379
    %v383 = vsub.f32 %v349, %v376
    %v384 = vsub.f32 %v352, %v380
    %v385 = vmul.f32 %v383, 1.442695
    %v386 = vpow.pop %v385
    %v387 = vmul.f32 %v384, 1.442695
    %v388 = vpow.pop %v387
    %391 = vset.pattern.permute.xlu0 0
    %392 = vperm.xlu0 %391, %v386
    %v393 = vpop.permute.xlu0 %392
    %394 = vset.pattern.permute.xlu0 0
    %395 = vperm.xlu0 %394, %v388
    %v396 = vpop.permute.xlu0 %395
    %v397 = vlaneseq
    %v398 = vshrl.u32 %v397, 7
    %v399 = vsub.s32 %v356, %v398
    %v400 = vrot.slane %v393, %v399
    %v401 = vlaneseq
    %v402 = vshrl.u32 %v401, 7
    %v403 = vsub.s32 %v356, %v402
    %v404 = vrot.slane %v396, %v403
    %v405 = vsel %vm365, %v404, %v400
    %v407 = vsel %vm368, %v405, 0.0
    %408 = vadd.xlane.f32.xlu0 %v407
    %v409 = vpop.xlane.xlu0 %408
    %v412 = vmul.f32 %v393, %v306
    %v413 = vmul.f32 %v396, %v309
    %v414 = vsel %vm123, %v412, 0.0
    %v415 = vrot.slane %v414, 4
    %v416 = vadd.f32 %v414, %v415
    %v417 = vrot.slane %v416, 2
    %v418 = vadd.f32 %v416, %v417
    %v419 = vrot.slane %v418, 1
    %v420 = vadd.f32 %v418, %v419
    %v421 = vsel %vm123, %v413, 0.0
    %v422 = vrot.slane %v421, 4
    %v423 = vadd.f32 %v421, %v422
    %v424 = vrot.slane %v423, 2
    %v425 = vadd.f32 %v423, %v424
    %v426 = vrot.slane %v425, 1
    %v427 = vadd.f32 %v425, %v426
    %v428 = vrcp.pop %v409
    %v430 = vrot.slane %v428, 1
    %v433 = vmul.f32 %v420, %v428
    %v434 = vmul.f32 %v427, %v430
    %v435 = vmul.f32 %v97, 0.1
    %v437 = vrot.slane %v435, 1
    %v440 = vadd.f32 %v433, %v435
    %v441 = vadd.f32 %v434, %v437
    %v444 = vrot.slane %v441, 7
    %v445 = vsel %vm365, %v444, %v440
    %vm447 = vcmask 254976
    %448 = vst.msk [vmem:[#allocation11] sm:$0x3] %vm447, %v445
    // Predicated region
    $region54: #{tpu_custom_call.1} parent=1 // pred_check
      _
    $region55: #{tpu_custom_call.1} parent=1 // pred_check_branch
      %450 = sbr.rel (0) target = $region57
    $region56: #{tpu_custom_call.1} parent=1 // pred_region
      %s452 = ssub.s32 32, 32
      %453 = vsyncadd [#allocation4], %s452
      %s455 = sshll.u32 [#allocation11], 4
      %s456 = int_to_ptr.vmem [resolvable:$true] %s455
      %458 = dma.vmem_to_hbm [thread:$0]  %s456, 32, %s8, [#allocation4]
    $region57: #{tpu_custom_call.1} parent=1 // pred_fallthru
      _
    // Predicated region
    $region58: #{tpu_custom_call.1} parent=1 // pred_check
      _
    $region59: #{tpu_custom_call.1} parent=1 // pred_check_branch
      %460 = sbr.rel (0) target = $region61
    $region60: #{tpu_custom_call.1} parent=1 // pred_region
      %461 = dma.done [#allocation4], 32
    $region61: #{tpu_custom_call.1} parent=1 // pred_fallthru
      _
    %462 = vsyncpa [#allocation3], 1
    %463 = vsyncpa [#allocation6], 1
    %464 = vsyncpa [#allocation9], 1
    %465 = vsyncpa [#allocation4], 1

</llo_original>
